<compile_context>
chip_gen: v5e
topology: v5e:2x2
jax: 0.10.0
libtpu: 0.0.40
codegen_flags: <defaults>
</compile_context>

<pallas_src>
import functools

import jax
import jax.numpy as jnp
from jax.experimental import pallas as pl
from jax.experimental.pallas import tpu as pltpu


LN_EPS = 1e-5


# ---------------------------------------------------------------------------
# Pallas kernel: fused LayerNorm + Linear (+ bias) + ReLU
# ---------------------------------------------------------------------------

def _ln_linear_relu_kernel(x_ref, g_ref, bta_ref, w_ref, b_ref, o_ref, xn_ref,
                           *, eps, layer_norm, relu):
    """One (tm, tn) output tile.

    x_ref:   (tm, D)   input rows, native dtype (full K so LayerNorm is exact)
    g_ref:   (1, D)    LayerNorm gamma (f32)
    bta_ref: (1, D)    LayerNorm beta  (f32)
    w_ref:   (D, tn)   bf16 weight slab (pre-transposed to (in, out))
    b_ref:   (1, tn)   linear bias (f32)
    o_ref:   (tm, tn)  output tile
    xn_ref:  (tm, D)   bf16 VMEM scratch holding the normalized activations;
                       written only at j == 0, reused for every output N-tile.
    """
    j = pl.program_id(1)

    @pl.when(j == 0)
    def _():
        x = x_ref[...].astype(jnp.float32)
        if layer_norm:
            # Single reduction pass: mean and E[x^2] together.
            mean = jnp.mean(x, axis=-1, keepdims=True)
            mean_sq = jnp.mean(x * x, axis=-1, keepdims=True)
            var = jnp.maximum(mean_sq - mean * mean, 0.0)
            inv = jax.lax.rsqrt(var + eps)                   # EUP, off the VPU path
            x = (x - mean) * inv * g_ref[...] + bta_ref[...]
        xn_ref[...] = x.astype(xn_ref.dtype)                 # cache as bf16

    # bf16 x bf16 -> f32 accumulate on the MXU.
    y = jnp.dot(xn_ref[...], w_ref[...], preferred_element_type=jnp.float32)
    y = y + b_ref[...]
    if relu:
        y = jnp.maximum(y, 0.0)
    o_ref[...] = y.astype(o_ref.dtype)


# ---------------------------------------------------------------------------
# Wrapper
# ---------------------------------------------------------------------------

def _round_up(x, m):
    return (x + m - 1) // m * m


def prepare_params(params, *, layer_norm=True, tn=256):
    """One-time (outside the jit'd hot path) weight prep: transpose, pad to a
    lane-dense output width, cast the weight slab to bf16."""
    w = jnp.asarray(params['w'])                    # (out_hsz, in_hsz), PyTorch layout
    b = jnp.asarray(params['b'])                    # (out_hsz,)
    out_hsz, in_hsz = w.shape

    tn = min(tn, _round_up(out_hsz, 128))
    Np = _round_up(out_hsz, tn)

    wt_p = jnp.pad(w.T.astype(jnp.bfloat16), ((0, 0), (0, Np - out_hsz)))  # (D, Np)
    b_p = jnp.pad(b.astype(jnp.float32), (0, Np - out_hsz)).reshape(1, Np)

    if layer_norm:
        gamma = jnp.asarray(params['ln_gamma']).astype(jnp.float32).reshape(1, in_hsz)
        beta = jnp.asarray(params['ln_beta']).astype(jnp.float32).reshape(1, in_hsz)
    else:
        gamma = jnp.ones((1, in_hsz), jnp.float32)
        beta = jnp.zeros((1, in_hsz), jnp.float32)

    return {'wt': wt_p, 'b': b_p, 'gamma': gamma, 'beta': beta,
            'out_hsz': out_hsz, 'tn': tn}


def linear_layer_forward(x, wt_p, b_p, gamma, beta, *, out_hsz, tn,
                         layer_norm=True, relu=True, eps=LN_EPS, tm=256,
                         out_dtype=None):
    """Forward of LinearLayer.  x: (N, L, D) -> (N, L, out_hsz)."""
    N, L, D = x.shape
    M = N * L
    out_dtype = out_dtype or x.dtype

    x2 = x.reshape(M, D)                            # native dtype, no upcast
    Np = wt_p.shape[1]
    assert Np % tn == 0

    # TODO(synk): training-mode nn.Dropout (random mask) not implemented;
    #             inference-mode dropout is the identity, which is what we use.

    # Pad rows (M) to a tile multiple; output lanes already padded in prep.
    tm = min(tm, _round_up(M, 8))
    Mp = _round_up(M, tm)
    x_p = jnp.pad(x2, ((0, Mp - M), (0, 0)))

    grid = (Mp // tm, Np // tn)

    kernel = functools.partial(_ln_linear_relu_kernel, eps=eps,
                               layer_norm=layer_norm, relu=relu)

    out_p = pl.pallas_call(
        kernel,
        out_shape=jax.ShapeDtypeStruct((Mp, Np), out_dtype),
        grid=grid,
        in_specs=[
            pl.BlockSpec((tm, D), lambda i, j: (i, 0)),     # activations (full K)
            pl.BlockSpec((1, D), lambda i, j: (0, 0)),      # LN gamma
            pl.BlockSpec((1, D), lambda i, j: (0, 0)),      # LN beta
            pl.BlockSpec((D, tn), lambda i, j: (0, j)),     # bf16 weight slab
            pl.BlockSpec((1, tn), lambda i, j: (0, j)),     # linear bias
        ],
        out_specs=pl.BlockSpec((tm, tn), lambda i, j: (i, j)),
        scratch_shapes=[pltpu.VMEM((tm, D), jnp.bfloat16)], # normalized-x cache
        compiler_params=pltpu.CompilerParams(
            # i: independent M-tiles (megacore-parallel); j: sequential so the
            # normalized-x scratch written at j == 0 is valid for all j.
            dimension_semantics=("parallel", "arbitrary"),
            vmem_limit_bytes=48 * 1024 * 1024,
        ),
    )(x_p, gamma, beta, wt_p, b_p)

    return out_p[:M, :out_hsz].reshape(N, L, out_hsz)


# ---------------------------------------------------------------------------
# Pure-JAX reference (matches the PyTorch module at inference)
# ---------------------------------------------------------------------------

def reference_forward(x, params, *, layer_norm=True, relu=True, eps=LN_EPS):
    x = x.astype(jnp.float32)
    if layer_norm:
        mean = x.mean(-1, keepdims=True)
        var = ((x - mean) ** 2).mean(-1, keepdims=True)
        x = (x - mean) / jnp.sqrt(var + eps) * params['ln_gamma'] + params['ln_beta']
    y = x @ params['w'].T + params['b']
    if relu:
        y = jnp.maximum(y, 0.0)
    return y


# ---------------------------------------------------------------------------
# Main
# ---------------------------------------------------------------------------

if __name__ == "__main__":
    # Small shapes consistent with the module's (N, L, D) contract; hidden dims
    # lane-dense (multiples of 128).
    N, L = 2, 64
    IN_HSZ, OUT_HSZ = 256, 128

    key = jax.random.PRNGKey(0)
    kx, kw, kb, kg, kbt = jax.random.split(key, 5)

    x = jax.random.normal(kx, (N, L, IN_HSZ), jnp.float32)
    params = {
        'ln_gamma': 1.0 + 0.1 * jax.random.normal(kg, (IN_HSZ,), jnp.float32),
        'ln_beta': 0.1 * jax.random.normal(kbt, (IN_HSZ,), jnp.float32),
        'w': 0.05 * jax.random.normal(kw, (OUT_HSZ, IN_HSZ), jnp.float32),
        'b': 0.02 * jax.random.normal(kb, (OUT_HSZ,), jnp.float32),
    }

    # One-time weight prep (transpose + pad + bf16 cast) outside the hot path.
    prep = prepare_params(params, layer_norm=True)

    fwd = jax.jit(functools.partial(
        linear_layer_forward,
        out_hsz=prep['out_hsz'], tn=prep['tn'],
        layer_norm=True, relu=True))

    out = fwd(x, prep['wt'], prep['b'], prep['gamma'], prep['beta'])
    out = jax.block_until_ready(out)

    assert out.shape == (N, L, OUT_HSZ), out.shape
    assert bool(jnp.all(jnp.isfinite(out)))

    # bf16 MXU feed -> relaxed tolerance vs. the f32 reference.
    ref = reference_forward(x, params, layer_norm=True, relu=True)
    assert bool(jnp.allclose(out, ref, rtol=2e-2, atol=2e-2)), \
        float(jnp.max(jnp.abs(out - ref)))

    print("KERNEL_OK")
</pallas_src>

<mosaic_0001>
module attributes {stable_mosaic.version = 11 : i64} {
  func.func @_ln_linear_relu_kernel(%arg0: i32, %arg1: i32, %arg2: memref<128x256xf32, #tpu.memory_space<vmem>>, %arg3: memref<1x256xf32, #tpu.memory_space<vmem>>, %arg4: memref<1x256xf32, #tpu.memory_space<vmem>>, %arg5: memref<256x128xbf16, #tpu.memory_space<vmem>>, %arg6: memref<1x128xf32, #tpu.memory_space<vmem>>, %arg7: memref<128x128xf32, #tpu.memory_space<vmem>>, %arg8: memref<128x256xbf16, #tpu.memory_space<vmem>>) attributes {dimension_semantics = [#tpu.dimension_semantics<parallel>, #tpu.dimension_semantics<arbitrary>], iteration_bounds = array<i64: 1, 1>, scalar_prefetch = 0 : i64, scratch_operands = 1 : i64, tpu.core_type = #tpu.core_type<tc>, window_params = [{transform_indices = @transform_0, window_bounds = array<i64: 128, 256>}, {pipeline_mode = #tpu.pipeline_mode<synchronous>, transform_indices = @transform_1, window_bounds = array<i64: 1, 256>}, {pipeline_mode = #tpu.pipeline_mode<synchronous>, transform_indices = @transform_2, window_bounds = array<i64: 1, 256>}, {transform_indices = @transform_3, window_bounds = array<i64: 256, 128>}, {transform_indices = @transform_4, window_bounds = array<i64: 1, 128>}, {transform_indices = @transform_5, window_bounds = array<i64: 128, 128>}]} {
    %c0_i32 = arith.constant 0 : i32
    %0 = arith.cmpi eq, %arg1, %c0_i32 : i32
    %1 = arith.extui %0 : i1 to i32
    %c0_i32_0 = arith.constant 0 : i32
    %2 = arith.cmpi ne, %1, %c0_i32_0 : i32
    scf.if %2 {
      %c0_9 = arith.constant 0 : index
      %c0_10 = arith.constant 0 : index
      %12 = vector.load %arg2[%c0_9, %c0_10] : memref<128x256xf32, #tpu.memory_space<vmem>>, vector<128x256xf32>
      %cst_11 = arith.constant dense<0.000000e+00> : vector<128xf32>
      %13 = vector.multi_reduction <add>, %12, %cst_11 [1] : vector<128x256xf32> to vector<128xf32>
      %14 = vector.shape_cast %13 : vector<128xf32> to vector<128x1xf32>
      %cst_12 = arith.constant 2.560000e+02 : f32
      %15 = vector.broadcast %cst_12 : f32 to vector<128x1xf32>
      %16 = arith.divf %14, %15 : vector<128x1xf32>
      %17 = arith.mulf %12, %12 : vector<128x256xf32>
      %cst_13 = arith.constant dense<0.000000e+00> : vector<128xf32>
      %18 = vector.multi_reduction <add>, %17, %cst_13 [1] : vector<128x256xf32> to vector<128xf32>
      %19 = vector.shape_cast %18 : vector<128xf32> to vector<128x1xf32>
      %cst_14 = arith.constant 2.560000e+02 : f32
      %20 = vector.broadcast %cst_14 : f32 to vector<128x1xf32>
      %21 = arith.divf %19, %20 : vector<128x1xf32>
      %22 = arith.mulf %16, %16 : vector<128x1xf32>
      %23 = arith.subf %21, %22 : vector<128x1xf32>
      %cst_15 = arith.constant 0.000000e+00 : f32
      %24 = vector.broadcast %cst_15 : f32 to vector<128x1xf32>
      %25 = arith.maximumf %23, %24 : vector<128x1xf32>
      %cst_16 = arith.constant 9.99999974E-6 : f32
      %26 = vector.broadcast %cst_16 : f32 to vector<128x1xf32>
      %27 = arith.addf %25, %26 : vector<128x1xf32>
      %28 = math.rsqrt %27 : vector<128x1xf32>
      %29 = vector.broadcast %16 : vector<128x1xf32> to vector<128x256xf32>
      %30 = arith.subf %12, %29 : vector<128x256xf32>
      %31 = vector.broadcast %28 : vector<128x1xf32> to vector<128x256xf32>
      %32 = arith.mulf %30, %31 : vector<128x256xf32>
      %c0_17 = arith.constant 0 : index
      %c0_18 = arith.constant 0 : index
      %33 = vector.load %arg3[%c0_17, %c0_18] : memref<1x256xf32, #tpu.memory_space<vmem>>, vector<1x256xf32>
      %34 = vector.broadcast %33 : vector<1x256xf32> to vector<128x256xf32>
      %35 = arith.mulf %32, %34 : vector<128x256xf32>
      %c0_19 = arith.constant 0 : index
      %c0_20 = arith.constant 0 : index
      %36 = vector.load %arg4[%c0_19, %c0_20] : memref<1x256xf32, #tpu.memory_space<vmem>>, vector<1x256xf32>
      %37 = vector.broadcast %36 : vector<1x256xf32> to vector<128x256xf32>
      %38 = arith.addf %35, %37 : vector<128x256xf32>
      %39 = arith.truncf %38 : vector<128x256xf32> to vector<128x256xbf16>
      %c0_21 = arith.constant 0 : index
      %c0_22 = arith.constant 0 : index
      %40 = vector.load %arg8[%c0_21, %c0_22] : memref<128x256xbf16, #tpu.memory_space<vmem>>, vector<128x256xbf16>
      tpu.vector_store %arg8[%c0_21, %c0_22], %39 {strides = array<i32>} : memref<128x256xbf16, #tpu.memory_space<vmem>>, vector<128x256xbf16>,
    } else {
    }
    %c0 = arith.constant 0 : index
    %c0_1 = arith.constant 0 : index
    %3 = vector.load %arg8[%c0, %c0_1] : memref<128x256xbf16, #tpu.memory_space<vmem>>, vector<128x256xbf16>
    %c0_2 = arith.constant 0 : index
    %c0_3 = arith.constant 0 : index
    %4 = vector.load %arg5[%c0_2, %c0_3] : memref<256x128xbf16, #tpu.memory_space<vmem>>, vector<256x128xbf16>
    %cst = arith.constant dense<0.000000e+00> : vector<128x128xf32>
    %5 = tpu.matmul %3, %4, %cst {dimension_numbers = #tpu.dot_dimension_numbers<[1], [0], [0], [1], [0, 0, 1, 1], [], []>} : vector<128x256xbf16>, vector<256x128xbf16>, vector<128x128xf32> -> vector<128x128xf32>
    %c0_4 = arith.constant 0 : index
    %c0_5 = arith.constant 0 : index
    %6 = vector.load %arg6[%c0_4, %c0_5] : memref<1x128xf32, #tpu.memory_space<vmem>>, vector<1x128xf32>
    %7 = vector.broadcast %6 : vector<1x128xf32> to vector<128x128xf32>
    %8 = arith.addf %5, %7 : vector<128x128xf32>
    %cst_6 = arith.constant 0.000000e+00 : f32
    %9 = vector.broadcast %cst_6 : f32 to vector<128x128xf32>
    %10 = arith.maximumf %8, %9 : vector<128x128xf32>
    %c0_7 = arith.constant 0 : index
    %c0_8 = arith.constant 0 : index
    %11 = vector.load %arg7[%c0_7, %c0_8] : memref<128x128xf32, #tpu.memory_space<vmem>>, vector<128x128xf32>
    tpu.vector_store %arg7[%c0_7, %c0_8], %10 {strides = array<i32>} : memref<128x128xf32, #tpu.memory_space<vmem>>, vector<128x128xf32>,
    return
  }
  func.func @transform_0(%arg0: i32, %arg1: i32) -> (i32, i32) {
    %c0_i32 = arith.constant 0 : i32
    %c0_i32_0 = arith.constant 0 : i32
    return %arg0, %c0_i32 : i32, i32
  }
  func.func @transform_1(%arg0: i32, %arg1: i32) -> (i32, i32) {
    %c0_i32 = arith.constant 0 : i32
    %c0_i32_0 = arith.constant 0 : i32
    %c0_i32_1 = arith.constant 0 : i32
    return %c0_i32, %c0_i32_0 : i32, i32
  }
  func.func @transform_2(%arg0: i32, %arg1: i32) -> (i32, i32) {
    %c0_i32 = arith.constant 0 : i32
    %c0_i32_0 = arith.constant 0 : i32
    %c0_i32_1 = arith.constant 0 : i32
    return %c0_i32, %c0_i32_0 : i32, i32
  }
  func.func @transform_3(%arg0: i32, %arg1: i32) -> (i32, i32) {
    %c0_i32 = arith.constant 0 : i32
    %c0_i32_0 = arith.constant 0 : i32
    return %c0_i32, %arg1 : i32, i32
  }
  func.func @transform_4(%arg0: i32, %arg1: i32) -> (i32, i32) {
    %c0_i32 = arith.constant 0 : i32
    %c0_i32_0 = arith.constant 0 : i32
    return %c0_i32, %arg1 : i32, i32
  }
  func.func @transform_5(%arg0: i32, %arg1: i32) -> (i32, i32) {
    %c0_i32 = arith.constant 0 : i32
    return %arg0, %arg1 : i32, i32
  }
}

</mosaic_0001>

<llo_original>
// kernel: linear_layer_forward.1
$region0: #{linear_layer_forward.1}
  #allocation0 [shape = 'u32[]', space=smem, size = 0x4, offset = 0x4, fixed_abs, tag = 'smem constant byte address 0x4 - core index']
  #allocation1 [shape = 'u32[72,128]{1,0:T(1,128)}', space=vmem, size = 0x9000, scoped, tag = 'internal scratch']
  #allocation2 [shape = 'bf16[128,256]{1,0:T(8,128)(2,1)}', space=vmem, size = 0x10000, scoped, tag = 'scratch operand']
  %s0 = inlined_call_operand.hbm [shape: f32[128,256], index: 0, kind: input, shape index: {}]
  %s1 = inlined_call_operand.vmem [shape: f32[1,256], index: 1, kind: input, shape index: {}]
  %s2 = inlined_call_operand.vmem [shape: f32[1,256], index: 2, kind: input, shape index: {}]
  %s3 = inlined_call_operand.hbm [shape: bf16[256,128], index: 3, kind: input, shape index: {}]
  %s4 = inlined_call_operand.hbm [shape: f32[1,128], index: 4, kind: input, shape index: {}]
  %s5 = inlined_call_operand.hbm [shape: f32[128,128], index: 5, kind: output, shape index: {}]
  %s6 = sld [smem:[#allocation0]]
  $region46: #{linear_layer_forward.1} parent=0
    _
  %s8 = ssub.s32 1, %s6
  %s9 = scalar_select 0, %s8, %s6
  $region1: #{linear_layer_forward.1} parent=0
    #allocation3 [shape = 'u8[131072]{0}', space=vmem, size = 0x20000, scoped, tag = 'input window, operand 0, single buffered']
    #allocation4 [shape = 's32[1]{0}', space=sflag, size = 0x4, scoped, tag = 'scoped memory for linear_layer_forward.1']
    #allocation5 [shape = 's32[1]{0}', space=sflag, size = 0x4, scoped, tag = 'scoped memory for linear_layer_forward.1']
    #allocation6 [shape = 'u8[65536]{0}', space=vmem, size = 0x10000, scoped, tag = 'input window, operand 3, single buffered']
    #allocation7 [shape = 's32[1]{0}', space=sflag, size = 0x4, scoped, tag = 'scoped memory for linear_layer_forward.1']
    #allocation8 [shape = 'u8[512]{0}', space=vmem, size = 0x400, scoped, tag = 'input window, operand 4, single buffered']
    #allocation9 [shape = 'u8[65536]{0}', space=vmem, size = 0x10000, scoped, tag = 'output window, operand 0, single buffered']
    %10 = vsyncpa [#allocation4], 0
    %11 = vsyncpa [#allocation7], 0
    %12 = vsyncpa [#allocation5], 0
    // Predicated region
    $region2: #{linear_layer_forward.1} parent=1 // pred_check
      _
    $region3: #{linear_layer_forward.1} parent=1 // pred_check_branch
      %14 = sbr.rel (0) target = $region5
    $region4: #{linear_layer_forward.1} parent=1 // pred_region
      %16 = vsyncadd [#allocation4], 0
      %s17 = sshll.u32 %s0, 4
      %s18 = int_to_ptr.hbm [resolvable:$true] %s17
      %s19 = sshll.u32 [#allocation3], 4
      %s20 = int_to_ptr.vmem [resolvable:$true] %s19
      %25 = dma.hbm_to_vmem [thread:$0]  %s18, 4096, %s20, [#allocation4], 256, 256, 16
    $region5: #{linear_layer_forward.1} parent=1 // pred_fallthru
      _
    // Predicated region
    $region6: #{linear_layer_forward.1} parent=1 // pred_check
      _
    $region7: #{linear_layer_forward.1} parent=1 // pred_check_branch
      %27 = sbr.rel (0) target = $region9
    $region8: #{linear_layer_forward.1} parent=1 // pred_region
      _
    $region9: #{linear_layer_forward.1} parent=1 // pred_fallthru
      _
    // Predicated region
    $region10: #{linear_layer_forward.1} parent=1 // pred_check
      _
    $region11: #{linear_layer_forward.1} parent=1 // pred_check_branch
      %29 = sbr.rel (0) target = $region13
    $region12: #{linear_layer_forward.1} parent=1 // pred_region
      _
    $region13: #{linear_layer_forward.1} parent=1 // pred_fallthru
      _
    // Predicated region
    $region14: #{linear_layer_forward.1} parent=1 // pred_check
      _
    $region15: #{linear_layer_forward.1} parent=1 // pred_check_branch
      %31 = sbr.rel (0) target = $region17
    $region16: #{linear_layer_forward.1} parent=1 // pred_region
      %33 = vsyncadd [#allocation7], 0
      %s34 = sshll.u32 %s3, 4
      %s35 = int_to_ptr.hbm [resolvable:$true] %s34
      %s36 = sshll.u32 [#allocation6], 4
      %s37 = int_to_ptr.vmem [resolvable:$true] %s36
      %42 = dma.hbm_to_vmem [thread:$0]  %s35, 2048, %s37, [#allocation7], 64, 64, 4
    $region17: #{linear_layer_forward.1} parent=1 // pred_fallthru
      _
    // Predicated region
    $region18: #{linear_layer_forward.1} parent=1 // pred_check
      _
    $region19: #{linear_layer_forward.1} parent=1 // pred_check_branch
      %44 = sbr.rel (0) target = $region21
    $region20: #{linear_layer_forward.1} parent=1 // pred_region
      %46 = vsyncadd [#allocation7], 0
      %s48 = sshll.u32 %s4, 4
      %s49 = int_to_ptr.hbm [resolvable:$true] %s48
      %s50 = sshll.u32 [#allocation8], 4
      %s51 = int_to_ptr.vmem [resolvable:$true] %s50
      %53 = dma.hbm_to_vmem [thread:$0]  %s49, 16, %s51, [#allocation7]
    $region21: #{linear_layer_forward.1} parent=1 // pred_fallthru
      _
    // Predicated region
    $region22: #{linear_layer_forward.1} parent=1 // pred_check
      _
    $region23: #{linear_layer_forward.1} parent=1 // pred_check_branch
      %55 = sbr.rel (0) target = $region25
    $region24: #{linear_layer_forward.1} parent=1 // pred_region
      %57 = dma.done [#allocation4], 4096
    $region25: #{linear_layer_forward.1} parent=1 // pred_fallthru
      _
    // Predicated region
    $region26: #{linear_layer_forward.1} parent=1 // pred_check
      _
    $region27: #{linear_layer_forward.1} parent=1 // pred_check_branch
      %59 = sbr.rel (0) target = $region29
    $region28: #{linear_layer_forward.1} parent=1 // pred_region
      %61 = dma.done [#allocation7], 2048
    $region29: #{linear_layer_forward.1} parent=1 // pred_fallthru
      _
    // Predicated region
    $region30: #{linear_layer_forward.1} parent=1 // pred_check
      _
    $region31: #{linear_layer_forward.1} parent=1 // pred_check_branch
      %63 = sbr.rel (0) target = $region33
    $region32: #{linear_layer_forward.1} parent=1 // pred_region
      %65 = dma.done [#allocation7], 16
    $region33: #{linear_layer_forward.1} parent=1 // pred_fallthru
      _
    %p66 = scmp.eq.s32.totalorder 0, 0
    // Predicated region
    $region34: #{linear_layer_forward.1} parent=1 // pred_check
      %p67 = pneg %p66
    $region35: #{linear_layer_forward.1} parent=1 // pred_check_branch
      %69 = sbr.rel (%p67) target = $region37
    $region36: #{linear_layer_forward.1} parent=1 // pred_region
      %v70 = vld [vmem:[#allocation3] sm:$0xff]
      %v71 = vld [vmem:[#allocation3 + $0x8] sm:$0xff]
      %v72 = vld [vmem:[#allocation3 + $0x10] sm:$0xff]
      %v73 = vld [vmem:[#allocation3 + $0x18] sm:$0xff]
      %v74 = vld [vmem:[#allocation3 + $0x20] sm:$0xff]
      %v75 = vld [vmem:[#allocation3 + $0x28] sm:$0xff]
      %v76 = vld [vmem:[#allocation3 + $0x30] sm:$0xff]
      %v77 = vld [vmem:[#allocation3 + $0x38] sm:$0xff]
      %v78 = vld [vmem:[#allocation3 + $0x40] sm:$0xff]
      %v79 = vld [vmem:[#allocation3 + $0x48] sm:$0xff]
      %v80 = vld [vmem:[#allocation3 + $0x50] sm:$0xff]
      %v81 = vld [vmem:[#allocation3 + $0x58] sm:$0xff]
      %v82 = vld [vmem:[#allocation3 + $0x60] sm:$0xff]
      %v83 = vld [vmem:[#allocation3 + $0x68] sm:$0xff]
      %v84 = vld [vmem:[#allocation3 + $0x70] sm:$0xff]
      %v85 = vld [vmem:[#allocation3 + $0x78] sm:$0xff]
      %v86 = vld [vmem:[#allocation3 + $0x80] sm:$0xff]
      %v87 = vld [vmem:[#allocation3 + $0x88] sm:$0xff]
      %v88 = vld [vmem:[#allocation3 + $0x90] sm:$0xff]
      %v89 = vld [vmem:[#allocation3 + $0x98] sm:$0xff]
      %v90 = vld [vmem:[#allocation3 + $0xa0] sm:$0xff]
      %v91 = vld [vmem:[#allocation3 + $0xa8] sm:$0xff]
      %v92 = vld [vmem:[#allocation3 + $0xb0] sm:$0xff]
      %v93 = vld [vmem:[#allocation3 + $0xb8] sm:$0xff]
      %v94 = vld [vmem:[#allocation3 + $0xc0] sm:$0xff]
      %v95 = vld [vmem:[#allocation3 + $0xc8] sm:$0xff]
      %v96 = vld [vmem:[#allocation3 + $0xd0] sm:$0xff]
      %v97 = vld [vmem:[#allocation3 + $0xd8] sm:$0xff]
      %v98 = vld [vmem:[#allocation3 + $0xe0] sm:$0xff]
      %v99 = vld [vmem:[#allocation3 + $0xe8] sm:$0xff]
      %v100 = vld [vmem:[#allocation3 + $0xf0] sm:$0xff]
      %v101 = vld [vmem:[#allocation3 + $0xf8] sm:$0xff]
      %v102 = vadd.f32 %v70, %v71
      %103 = vadd.xlane.f32.xlu0 %v102
      %v104 = vpop.xlane.xlu0 %103
      %v105 = vadd.f32 %v72, %v73
      %106 = vadd.xlane.f32.xlu0 %v105
      %v107 = vpop.xlane.xlu0 %106
      %v108 = vadd.f32 %v74, %v75
      %109 = vadd.xlane.f32.xlu0 %v108
      %v110 = vpop.xlane.xlu0 %109
      %v111 = vadd.f32 %v76, %v77
      %112 = vadd.xlane.f32.xlu0 %v111
      %v113 = vpop.xlane.xlu0 %112
      %v114 = vadd.f32 %v78, %v79
      %115 = vadd.xlane.f32.xlu0 %v114
      %v116 = vpop.xlane.xlu0 %115
      %v117 = vadd.f32 %v80, %v81
      %118 = vadd.xlane.f32.xlu0 %v117
      %v119 = vpop.xlane.xlu0 %118
      %v120 = vadd.f32 %v82, %v83
      %121 = vadd.xlane.f32.xlu0 %v120
      %v122 = vpop.xlane.xlu0 %121
      %v123 = vadd.f32 %v84, %v85
      %124 = vadd.xlane.f32.xlu0 %v123
      %v125 = vpop.xlane.xlu0 %124
      %v126 = vadd.f32 %v86, %v87
      %127 = vadd.xlane.f32.xlu0 %v126
      %v128 = vpop.xlane.xlu0 %127
      %v129 = vadd.f32 %v88, %v89
      %130 = vadd.xlane.f32.xlu0 %v129
      %v131 = vpop.xlane.xlu0 %130
      %v132 = vadd.f32 %v90, %v91
      %133 = vadd.xlane.f32.xlu0 %v132
      %v134 = vpop.xlane.xlu0 %133
      %v135 = vadd.f32 %v92, %v93
      %136 = vadd.xlane.f32.xlu0 %v135
      %v137 = vpop.xlane.xlu0 %136
      %v138 = vadd.f32 %v94, %v95
      %139 = vadd.xlane.f32.xlu0 %v138
      %v140 = vpop.xlane.xlu0 %139
      %v141 = vadd.f32 %v96, %v97
      %142 = vadd.xlane.f32.xlu0 %v141
      %v143 = vpop.xlane.xlu0 %142
      %v144 = vadd.f32 %v98, %v99
      %145 = vadd.xlane.f32.xlu0 %v144
      %v146 = vpop.xlane.xlu0 %145
      %v147 = vadd.f32 %v100, %v101
      %148 = vadd.xlane.f32.xlu0 %v147
      %v149 = vpop.xlane.xlu0 %148
      %v150 = vrcp.pop 256.0
      %v151 = vmul.f32 256.0, %v150
      %v152 = vsub.f32 1.0, %v151
      %v153 = vmul.f32 %v150, %v152
      %v154 = vadd.f32 %v150, %v153
      %vm155 = vweird.f32 %v150
      %v156 = vsel %vm155, %v150, %v154
      %v157 = vmul.f32 %v104, %v156
      %v158 = vmul.f32 %v107, %v156
      %v159 = vmul.f32 %v110, %v156
      %v160 = vmul.f32 %v113, %v156
      %v161 = vmul.f32 %v116, %v156
      %v162 = vmul.f32 %v119, %v156
      %v163 = vmul.f32 %v122, %v156
      %v164 = vmul.f32 %v125, %v156
      %v165 = vmul.f32 %v128, %v156
      %v166 = vmul.f32 %v131, %v156
      %v167 = vmul.f32 %v134, %v156
      %v168 = vmul.f32 %v137, %v156
      %v169 = vmul.f32 %v140, %v156
      %v170 = vmul.f32 %v143, %v156
      %v171 = vmul.f32 %v146, %v156
      %v172 = vmul.f32 %v149, %v156
      %v173 = vmul.f32 %v70, %v70
      %v174 = vmul.f32 %v71, %v71
      %v175 = vmul.f32 %v72, %v72
      %v176 = vmul.f32 %v73, %v73
      %v177 = vmul.f32 %v74, %v74
      %v178 = vmul.f32 %v75, %v75
      %v179 = vmul.f32 %v76, %v76
      %v180 = vmul.f32 %v77, %v77
      %v181 = vmul.f32 %v78, %v78
      %v182 = vmul.f32 %v79, %v79
      %v183 = vmul.f32 %v80, %v80
      %v184 = vmul.f32 %v81, %v81
      %v185 = vmul.f32 %v82, %v82
      %v186 = vmul.f32 %v83, %v83
      %v187 = vmul.f32 %v84, %v84
      %v188 = vmul.f32 %v85, %v85
      %v189 = vmul.f32 %v86, %v86
      %v190 = vmul.f32 %v87, %v87
      %v191 = vmul.f32 %v88, %v88
      %v192 = vmul.f32 %v89, %v89
      %v193 = vmul.f32 %v90, %v90
      %v194 = vmul.f32 %v91, %v91
      %v195 = vmul.f32 %v92, %v92
      %v196 = vmul.f32 %v93, %v93
      %v197 = vmul.f32 %v94, %v94
      %v198 = vmul.f32 %v95, %v95
      %v199 = vmul.f32 %v96, %v96
      %v200 = vmul.f32 %v97, %v97
      %v201 = vmul.f32 %v98, %v98
      %v202 = vmul.f32 %v99, %v99
      %v203 = vmul.f32 %v100, %v100
      %v204 = vmul.f32 %v101, %v101
      %v205 = vadd.f32 %v173, %v174
      %206 = vadd.xlane.f32.xlu0 %v205
      %v207 = vpop.xlane.xlu0 %206
      %v208 = vadd.f32 %v175, %v176
      %209 = vadd.xlane.f32.xlu0 %v208
      %v210 = vpop.xlane.xlu0 %209
      %v211 = vadd.f32 %v177, %v178
      %212 = vadd.xlane.f32.xlu0 %v211
      %v213 = vpop.xlane.xlu0 %212
      %v214 = vadd.f32 %v179, %v180
      %215 = vadd.xlane.f32.xlu0 %v214
      %v216 = vpop.xlane.xlu0 %215
      %v217 = vadd.f32 %v181, %v182
      %218 = vadd.xlane.f32.xlu0 %v217
      %v219 = vpop.xlane.xlu0 %218
      %v220 = vadd.f32 %v183, %v184
      %221 = vadd.xlane.f32.xlu0 %v220
      %v222 = vpop.xlane.xlu0 %221
      %v223 = vadd.f32 %v185, %v186
      %224 = vadd.xlane.f32.xlu0 %v223
      %v225 = vpop.xlane.xlu0 %224
      %v226 = vadd.f32 %v187, %v188
      %227 = vadd.xlane.f32.xlu0 %v226
      %v228 = vpop.xlane.xlu0 %227
      %v229 = vadd.f32 %v189, %v190
      %230 = vadd.xlane.f32.xlu0 %v229
      %v231 = vpop.xlane.xlu0 %230
      %v232 = vadd.f32 %v191, %v192
      %233 = vadd.xlane.f32.xlu0 %v232
      %v234 = vpop.xlane.xlu0 %233
      %v235 = vadd.f32 %v193, %v194
      %236 = vadd.xlane.f32.xlu0 %v235
      %v237 = vpop.xlane.xlu0 %236
      %v238 = vadd.f32 %v195, %v196
      %239 = vadd.xlane.f32.xlu0 %v238
      %v240 = vpop.xlane.xlu0 %239
      %v241 = vadd.f32 %v197, %v198
      %242 = vadd.xlane.f32.xlu0 %v241
      %v243 = vpop.xlane.xlu0 %242
      %v244 = vadd.f32 %v199, %v200
      %245 = vadd.xlane.f32.xlu0 %v244
      %v246 = vpop.xlane.xlu0 %245
      %v247 = vadd.f32 %v201, %v202
      %248 = vadd.xlane.f32.xlu0 %v247
      %v249 = vpop.xlane.xlu0 %248
      %v250 = vadd.f32 %v203, %v204
      %251 = vadd.xlane.f32.xlu0 %v250
      %v252 = vpop.xlane.xlu0 %251
      %v253 = vmul.f32 %v207, %v156
      %v254 = vmul.f32 %v210, %v156
      %v255 = vmul.f32 %v213, %v156
      %v256 = vmul.f32 %v216, %v156
      %v257 = vmul.f32 %v219, %v156
      %v258 = vmul.f32 %v222, %v156
      %v259 = vmul.f32 %v225, %v156
      %v260 = vmul.f32 %v228, %v156
      %v261 = vmul.f32 %v231, %v156
      %v262 = vmul.f32 %v234, %v156
      %v263 = vmul.f32 %v237, %v156
      %v264 = vmul.f32 %v240, %v156
      %v265 = vmul.f32 %v243, %v156
      %v266 = vmul.f32 %v246, %v156
      %v267 = vmul.f32 %v249, %v156
      %v268 = vmul.f32 %v252, %v156
      %v269 = vmul.f32 %v157, %v157
      %v270 = vmul.f32 %v158, %v158
      %v271 = vmul.f32 %v159, %v159
      %v272 = vmul.f32 %v160, %v160
      %v273 = vmul.f32 %v161, %v161
      %v274 = vmul.f32 %v162, %v162
      %v275 = vmul.f32 %v163, %v163
      %v276 = vmul.f32 %v164, %v164
      %v277 = vmul.f32 %v165, %v165
      %v278 = vmul.f32 %v166, %v166
      %v279 = vmul.f32 %v167, %v167
      %v280 = vmul.f32 %v168, %v168
      %v281 = vmul.f32 %v169, %v169
      %v282 = vmul.f32 %v170, %v170
      %v283 = vmul.f32 %v171, %v171
      %v284 = vmul.f32 %v172, %v172
      %v285 = vsub.f32 %v253, %v269
      %v286 = vsub.f32 %v254, %v270
      %v287 = vsub.f32 %v255, %v271
      %v288 = vsub.f32 %v256, %v272
      %v289 = vsub.f32 %v257, %v273
      %v290 = vsub.f32 %v258, %v274
      %v291 = vsub.f32 %v259, %v275
      %v292 = vsub.f32 %v260, %v276
      %v293 = vsub.f32 %v261, %v277
      %v294 = vsub.f32 %v262, %v278
      %v295 = vsub.f32 %v263, %v279
      %v296 = vsub.f32 %v264, %v280
      %v297 = vsub.f32 %v265, %v281
      %v298 = vsub.f32 %v266, %v282
      %v299 = vsub.f32 %v267, %v283
      %v300 = vsub.f32 %v268, %v284
      %v301 = vmax.f32 %v285, 0.0
      %v302 = vmax.f32 %v286, 0.0
      %v303 = vmax.f32 %v287, 0.0
      %v304 = vmax.f32 %v288, 0.0
      %v305 = vmax.f32 %v289, 0.0
      %v306 = vmax.f32 %v290, 0.0
      %v307 = vmax.f32 %v291, 0.0
      %v308 = vmax.f32 %v292, 0.0
      %v309 = vmax.f32 %v293, 0.0
      %v310 = vmax.f32 %v294, 0.0
      %v311 = vmax.f32 %v295, 0.0
      %v312 = vmax.f32 %v296, 0.0
      %v313 = vmax.f32 %v297, 0.0
      %v314 = vmax.f32 %v298, 0.0
      %v315 = vmax.f32 %v299, 0.0
      %v316 = vmax.f32 %v300, 0.0
      %v317 = vadd.f32 %v301, 1e-05
      %v318 = vadd.f32 %v302, 1e-05
      %v319 = vadd.f32 %v303, 1e-05
      %v320 = vadd.f32 %v304, 1e-05
      %v321 = vadd.f32 %v305, 1e-05
      %v322 = vadd.f32 %v306, 1e-05
      %v323 = vadd.f32 %v307, 1e-05
      %v324 = vadd.f32 %v308, 1e-05
      %v325 = vadd.f32 %v309, 1e-05
      %v326 = vadd.f32 %v310, 1e-05
      %v327 = vadd.f32 %v311, 1e-05
      %v328 = vadd.f32 %v312, 1e-05
      %v329 = vadd.f32 %v313, 1e-05
      %v330 = vadd.f32 %v314, 1e-05
      %v331 = vadd.f32 %v315, 1e-05
      %v332 = vadd.f32 %v316, 1e-05
      %v333 = vrsqrt.pop %v317
      %v334 = vmul.f32 %v333, %v317
      %v335 = vmul.f32 %v334, %v333
      %v336 = vmul.f32 0.5, %v335
      %v337 = vsub.f32 1.5, %v336
      %v338 = vmul.f32 %v333, %v337
      %vm339 = vweird.f32 %v317
      %vm340 = vweird.f32 %v333
      %vm341 = vmor %vm339, %vm340
      %v342 = vsel %vm341, %v333, %v338
      %v343 = vrsqrt.pop %v318
      %v344 = vmul.f32 %v343, %v318
      %v345 = vmul.f32 %v344, %v343
      %v346 = vmul.f32 0.5, %v345
      %v347 = vsub.f32 1.5, %v346
      %v348 = vmul.f32 %v343, %v347
      %vm349 = vweird.f32 %v318
      %vm350 = vweird.f32 %v343
      %vm351 = vmor %vm349, %vm350
      %v352 = vsel %vm351, %v343, %v348
      %v353 = vrsqrt.pop %v319
      %v354 = vmul.f32 %v353, %v319
      %v355 = vmul.f32 %v354, %v353
      %v356 = vmul.f32 0.5, %v355
      %v357 = vsub.f32 1.5, %v356
      %v358 = vmul.f32 %v353, %v357
      %vm359 = vweird.f32 %v319
      %vm360 = vweird.f32 %v353
      %vm361 = vmor %vm359, %vm360
      %v362 = vsel %vm361, %v353, %v358
      %v363 = vrsqrt.pop %v320
      %v364 = vmul.f32 %v363, %v320
      %v365 = vmul.f32 %v364, %v363
      %v366 = vmul.f32 0.5, %v365
      %v367 = vsub.f32 1.5, %v366
      %v368 = vmul.f32 %v363, %v367
      %vm369 = vweird.f32 %v320
      %vm370 = vweird.f32 %v363
      %vm371 = vmor %vm369, %vm370
      %v372 = vsel %vm371, %v363, %v368
      %v373 = vrsqrt.pop %v321
      %v374 = vmul.f32 %v373, %v321
      %v375 = vmul.f32 %v374, %v373
      %v376 = vmul.f32 0.5, %v375
      %v377 = vsub.f32 1.5, %v376
      %v378 = vmul.f32 %v373, %v377
      %vm379 = vweird.f32 %v321
      %vm380 = vweird.f32 %v373
      %vm381 = vmor %vm379, %vm380
      %v382 = vsel %vm381, %v373, %v378
      %v383 = vrsqrt.pop %v322
      %v384 = vmul.f32 %v383, %v322
      %v385 = vmul.f32 %v384, %v383
      %v386 = vmul.f32 0.5, %v385
      %v387 = vsub.f32 1.5, %v386
      %v388 = vmul.f32 %v383, %v387
      %vm389 = vweird.f32 %v322
      %vm390 = vweird.f32 %v383
      %vm391 = vmor %vm389, %vm390
      %v392 = vsel %vm391, %v383, %v388
      %v393 = vrsqrt.pop %v323
      %v394 = vmul.f32 %v393, %v323
      %v395 = vmul.f32 %v394, %v393
      %v396 = vmul.f32 0.5, %v395
      %v397 = vsub.f32 1.5, %v396
      %v398 = vmul.f32 %v393, %v397
      %vm399 = vweird.f32 %v323
      %vm400 = vweird.f32 %v393
      %vm401 = vmor %vm399, %vm400
      %v402 = vsel %vm401, %v393, %v398
      %v403 = vrsqrt.pop %v324
      %v404 = vmul.f32 %v403, %v324
      %v405 = vmul.f32 %v404, %v403
      %v406 = vmul.f32 0.5, %v405
      %v407 = vsub.f32 1.5, %v406
      %v408 = vmul.f32 %v403, %v407
      %vm409 = vweird.f32 %v324
      %vm410 = vweird.f32 %v403
      %vm411 = vmor %vm409, %vm410
      %v412 = vsel %vm411, %v403, %v408
      %v413 = vrsqrt.pop %v325
      %v414 = vmul.f32 %v413, %v325
      %v415 = vmul.f32 %v414, %v413
      %v416 = vmul.f32 0.5, %v415
      %v417 = vsub.f32 1.5, %v416
      %v418 = vmul.f32 %v413, %v417
      %vm419 = vweird.f32 %v325
      %vm420 = vweird.f32 %v413
      %vm421 = vmor %vm419, %vm420
      %v422 = vsel %vm421, %v413, %v418
      %v423 = vrsqrt.pop %v326
      %v424 = vmul.f32 %v423, %v326
      %v425 = vmul.f32 %v424, %v423
      %v426 = vmul.f32 0.5, %v425
      %v427 = vsub.f32 1.5, %v426
      %v428 = vmul.f32 %v423, %v427
      %vm429 = vweird.f32 %v326
      %vm430 = vweird.f32 %v423
      %vm431 = vmor %vm429, %vm430
      %v432 = vsel %vm431, %v423, %v428
      %v433 = vrsqrt.pop %v327
      %v434 = vmul.f32 %v433, %v327
      %v435 = vmul.f32 %v434, %v433
      %v436 = vmul.f32 0.5, %v435
      %v437 = vsub.f32 1.5, %v436
      %v438 = vmul.f32 %v433, %v437
      %vm439 = vweird.f32 %v327
      %vm440 = vweird.f32 %v433
      %vm441 = vmor %vm439, %vm440
      %v442 = vsel %vm441, %v433, %v438
      %v443 = vrsqrt.pop %v328
      %v444 = vmul.f32 %v443, %v328
      %v445 = vmul.f32 %v444, %v443
      %v446 = vmul.f32 0.5, %v445
      %v447 = vsub.f32 1.5, %v446
      %v448 = vmul.f32 %v443, %v447
      %vm449 = vweird.f32 %v328
      %vm450 = vweird.f32 %v443
      %vm451 = vmor %vm449, %vm450
      %v452 = vsel %vm451, %v443, %v448
      %v453 = vrsqrt.pop %v329
      %v454 = vmul.f32 %v453, %v329
      %v455 = vmul.f32 %v454, %v453
      %v456 = vmul.f32 0.5, %v455
      %v457 = vsub.f32 1.5, %v456
      %v458 = vmul.f32 %v453, %v457
      %vm459 = vweird.f32 %v329
      %vm460 = vweird.f32 %v453
      %vm461 = vmor %vm459, %vm460
      %v462 = vsel %vm461, %v453, %v458
      %v463 = vrsqrt.pop %v330
      %v464 = vmul.f32 %v463, %v330
      %v465 = vmul.f32 %v464, %v463
      %v466 = vmul.f32 0.5, %v465
      %v467 = vsub.f32 1.5, %v466
      %v468 = vmul.f32 %v463, %v467
      %vm469 = vweird.f32 %v330
      %vm470 = vweird.f32 %v463
      %vm471 = vmor %vm469, %vm470
      %v472 = vsel %vm471, %v463, %v468
      %v473 = vrsqrt.pop %v331
      %v474 = vmul.f32 %v473, %v331
      %v475 = vmul.f32 %v474, %v473
      %v476 = vmul.f32 0.5, %v475
      %v477 = vsub.f32 1.5, %v476
      %v478 = vmul.f32 %v473, %v477
      %vm479 = vweird.f32 %v331
      %vm480 = vweird.f32 %v473
      %vm481 = vmor %vm479, %vm480
      %v482 = vsel %vm481, %v473, %v478
      %v483 = vrsqrt.pop %v332
      %v484 = vmul.f32 %v483, %v332
      %v485 = vmul.f32 %v484, %v483
      %v486 = vmul.f32 0.5, %v485
      %v487 = vsub.f32 1.5, %v486
      %v488 = vmul.f32 %v483, %v487
      %vm489 = vweird.f32 %v332
      %vm490 = vweird.f32 %v483
      %vm491 = vmor %vm489, %vm490
      %v492 = vsel %vm491, %v483, %v488
      %v493 = vsub.f32 %v70, %v157
      %v494 = vsub.f32 %v71, %v157
      %v495 = vsub.f32 %v72, %v158
      %v496 = vsub.f32 %v73, %v158
      %v497 = vsub.f32 %v74, %v159
      %v498 = vsub.f32 %v75, %v159
      %v499 = vsub.f32 %v76, %v160
      %v500 = vsub.f32 %v77, %v160
      %v501 = vsub.f32 %v78, %v161
      %v502 = vsub.f32 %v79, %v161
      %v503 = vsub.f32 %v80, %v162
      %v504 = vsub.f32 %v81, %v162
      %v505 = vsub.f32 %v82, %v163
      %v506 = vsub.f32 %v83, %v163
      %v507 = vsub.f32 %v84, %v164
      %v508 = vsub.f32 %v85, %v164
      %v509 = vsub.f32 %v86, %v165
      %v510 = vsub.f32 %v87, %v165
      %v511 = vsub.f32 %v88, %v166
      %v512 = vsub.f32 %v89, %v166
      %v513 = vsub.f32 %v90, %v167
      %v514 = vsub.f32 %v91, %v167
      %v515 = vsub.f32 %v92, %v168
      %v516 = vsub.f32 %v93, %v168
      %v517 = vsub.f32 %v94, %v169
      %v518 = vsub.f32 %v95, %v169
      %v519 = vsub.f32 %v96, %v170
      %v520 = vsub.f32 %v97, %v170
      %v521 = vsub.f32 %v98, %v171
      %v522 = vsub.f32 %v99, %v171
      %v523 = vsub.f32 %v100, %v172
      %v524 = vsub.f32 %v101, %v172
      %v525 = vmul.f32 %v493, %v342
      %v526 = vmul.f32 %v494, %v342
      %v527 = vmul.f32 %v495, %v352
      %v528 = vmul.f32 %v496, %v352
      %v529 = vmul.f32 %v497, %v362
      %v530 = vmul.f32 %v498, %v362
      %v531 = vmul.f32 %v499, %v372
      %v532 = vmul.f32 %v500, %v372
      %v533 = vmul.f32 %v501, %v382
      %v534 = vmul.f32 %v502, %v382
      %v535 = vmul.f32 %v503, %v392
      %v536 = vmul.f32 %v504, %v392
      %v537 = vmul.f32 %v505, %v402
      %v538 = vmul.f32 %v506, %v402
      %v539 = vmul.f32 %v507, %v412
      %v540 = vmul.f32 %v508, %v412
      %v541 = vmul.f32 %v509, %v422
      %v542 = vmul.f32 %v510, %v422
      %v543 = vmul.f32 %v511, %v432
      %v544 = vmul.f32 %v512, %v432
      %v545 = vmul.f32 %v513, %v442
      %v546 = vmul.f32 %v514, %v442
      %v547 = vmul.f32 %v515, %v452
      %v548 = vmul.f32 %v516, %v452
      %v549 = vmul.f32 %v517, %v462
      %v550 = vmul.f32 %v518, %v462
      %v551 = vmul.f32 %v519, %v472
      %v552 = vmul.f32 %v520, %v472
      %v553 = vmul.f32 %v521, %v482
      %v554 = vmul.f32 %v522, %v482
      %v555 = vmul.f32 %v523, %v492
      %v556 = vmul.f32 %v524, %v492
      %v557 = vld [vmem:[%s1] sm:$0x3]
      %v559 = vperm.slane %v557, 0
      %v560 = vperm.slane %v557, 1
      %v563 = vmul.f32 %v525, %v559
      %v564 = vmul.f32 %v526, %v560
      %v565 = vmul.f32 %v527, %v559
      %v566 = vmul.f32 %v528, %v560
      %v567 = vmul.f32 %v529, %v559
      %v568 = vmul.f32 %v530, %v560
      %v569 = vmul.f32 %v531, %v559
      %v570 = vmul.f32 %v532, %v560
      %v571 = vmul.f32 %v533, %v559
      %v572 = vmul.f32 %v534, %v560
      %v573 = vmul.f32 %v535, %v559
      %v574 = vmul.f32 %v536, %v560
      %v575 = vmul.f32 %v537, %v559
      %v576 = vmul.f32 %v538, %v560
      %v577 = vmul.f32 %v539, %v559
      %v578 = vmul.f32 %v540, %v560
      %v579 = vmul.f32 %v541, %v559
      %v580 = vmul.f32 %v542, %v560
      %v581 = vmul.f32 %v543, %v559
      %v582 = vmul.f32 %v544, %v560
      %v583 = vmul.f32 %v545, %v559
      %v584 = vmul.f32 %v546, %v560
      %v585 = vmul.f32 %v547, %v559
      %v586 = vmul.f32 %v548, %v560
      %v587 = vmul.f32 %v549, %v559
      %v588 = vmul.f32 %v550, %v560
      %v589 = vmul.f32 %v551, %v559
      %v590 = vmul.f32 %v552, %v560
      %v591 = vmul.f32 %v553, %v559
      %v592 = vmul.f32 %v554, %v560
      %v593 = vmul.f32 %v555, %v559
      %v594 = vmul.f32 %v556, %v560
      %v595 = vld [vmem:[%s2] sm:$0x3]
      %v597 = vperm.slane %v595, 0
      %v598 = vperm.slane %v595, 1
      %v601 = vadd.f32 %v563, %v597
      %v602 = vadd.f32 %v564, %v598
      %v603 = vadd.f32 %v565, %v597
      %v604 = vadd.f32 %v566, %v598
      %v605 = vadd.f32 %v567, %v597
      %v606 = vadd.f32 %v568, %v598
      %v607 = vadd.f32 %v569, %v597
      %v608 = vadd.f32 %v570, %v598
      %v609 = vadd.f32 %v571, %v597
      %v610 = vadd.f32 %v572, %v598
      %v611 = vadd.f32 %v573, %v597
      %v612 = vadd.f32 %v574, %v598
      %v613 = vadd.f32 %v575, %v597
      %v614 = vadd.f32 %v576, %v598
      %v615 = vadd.f32 %v577, %v597
      %v616 = vadd.f32 %v578, %v598
      %v617 = vadd.f32 %v579, %v597
      %v618 = vadd.f32 %v580, %v598
      %v619 = vadd.f32 %v581, %v597
      %v620 = vadd.f32 %v582, %v598
      %v621 = vadd.f32 %v583, %v597
      %v622 = vadd.f32 %v584, %v598
      %v623 = vadd.f32 %v585, %v597
      %v624 = vadd.f32 %v586, %v598
      %v625 = vadd.f32 %v587, %v597
      %v626 = vadd.f32 %v588, %v598
      %v627 = vadd.f32 %v589, %v597
      %v628 = vadd.f32 %v590, %v598
      %v629 = vadd.f32 %v591, %v597
      %v630 = vadd.f32 %v592, %v598
      %v631 = vadd.f32 %v593, %v597
      %v632 = vadd.f32 %v594, %v598
      %v633 = vpack.c.bf16 %v602, %v601
      %v634 = vpack.c.bf16 %v604, %v603
      %v635 = vpack.c.bf16 %v606, %v605
      %v636 = vpack.c.bf16 %v608, %v607
      %v637 = vpack.c.bf16 %v610, %v609
      %v638 = vpack.c.bf16 %v612, %v611
      %v639 = vpack.c.bf16 %v614, %v613
      %v640 = vpack.c.bf16 %v616, %v615
      %v641 = vpack.c.bf16 %v618, %v617
      %v642 = vpack.c.bf16 %v620, %v619
      %v643 = vpack.c.bf16 %v622, %v621
      %v644 = vpack.c.bf16 %v624, %v623
      %v645 = vpack.c.bf16 %v626, %v625
      %v646 = vpack.c.bf16 %v628, %v627
      %v647 = vpack.c.bf16 %v630, %v629
      %v648 = vpack.c.bf16 %v632, %v631
      %649 = vst [vmem:[#allocation2] sm:$0xff] %v633
      %650 = vst [vmem:[#allocation2 + $0x8] sm:$0xff] %v634
      %651 = vst [vmem:[#allocation2 + $0x10] sm:$0xff] %v635
      %652 = vst [vmem:[#allocation2 + $0x18] sm:$0xff] %v636
      %653 = vst [vmem:[#allocation2 + $0x20] sm:$0xff] %v637
      %654 = vst [vmem:[#allocation2 + $0x28] sm:$0xff] %v638
      %655 = vst [vmem:[#allocation2 + $0x30] sm:$0xff] %v639
      %656 = vst [vmem:[#allocation2 + $0x38] sm:$0xff] %v640
      %657 = vst [vmem:[#allocation2 + $0x40] sm:$0xff] %v641
      %658 = vst [vmem:[#allocation2 + $0x48] sm:$0xff] %v642
      %659 = vst [vmem:[#allocation2 + $0x50] sm:$0xff] %v643
      %660 = vst [vmem:[#allocation2 + $0x58] sm:$0xff] %v644
      %661 = vst [vmem:[#allocation2 + $0x60] sm:$0xff] %v645
      %662 = vst [vmem:[#allocation2 + $0x68] sm:$0xff] %v646
      %663 = vst [vmem:[#allocation2 + $0x70] sm:$0xff] %v647
      %664 = vst [vmem:[#allocation2 + $0x78] sm:$0xff] %v648
    $region37: #{linear_layer_forward.1} parent=1 // pred_fallthru
      _
    %v665 = vld [vmem:[#allocation2] sm:$0xff]
    %v666 = vld [vmem:[#allocation2 + $0x8] sm:$0xff]
    %v667 = vld [vmem:[#allocation2 + $0x10] sm:$0xff]
    %v668 = vld [vmem:[#allocation2 + $0x18] sm:$0xff]
    %v669 = vld [vmem:[#allocation2 + $0x20] sm:$0xff]
    %v670 = vld [vmem:[#allocation2 + $0x28] sm:$0xff]
    %v671 = vld [vmem:[#allocation2 + $0x30] sm:$0xff]
    %v672 = vld [vmem:[#allocation2 + $0x38] sm:$0xff]
    %v673 = vld [vmem:[#allocation2 + $0x40] sm:$0xff]
    %v674 = vld [vmem:[#allocation2 + $0x48] sm:$0xff]
    %v675 = vld [vmem:[#allocation2 + $0x50] sm:$0xff]
    %v676 = vld [vmem:[#allocation2 + $0x58] sm:$0xff]
    %v677 = vld [vmem:[#allocation2 + $0x60] sm:$0xff]
    %v678 = vld [vmem:[#allocation2 + $0x68] sm:$0xff]
    %v679 = vld [vmem:[#allocation2 + $0x70] sm:$0xff]
    %v680 = vld [vmem:[#allocation2 + $0x78] sm:$0xff]
    %v681 = vld [vmem:[#allocation6] sm:$0xf]
    %v682 = vld [vmem:[#allocation6 + $0x4] sm:$0xf]
    %v683 = vld [vmem:[#allocation6 + $0x8] sm:$0xf]
    %v684 = vld [vmem:[#allocation6 + $0xc] sm:$0xf]
    %v685 = vld [vmem:[#allocation6 + $0x10] sm:$0xf]
    %v686 = vld [vmem:[#allocation6 + $0x14] sm:$0xf]
    %v687 = vld [vmem:[#allocation6 + $0x18] sm:$0xf]
    %v688 = vld [vmem:[#allocation6 + $0x1c] sm:$0xf]
    %v689 = vld [vmem:[#allocation6 + $0x20] sm:$0xf]
    %v690 = vld [vmem:[#allocation6 + $0x24] sm:$0xf]
    %v691 = vld [vmem:[#allocation6 + $0x28] sm:$0xf]
    %v692 = vld [vmem:[#allocation6 + $0x2c] sm:$0xf]
    %v693 = vld [vmem:[#allocation6 + $0x30] sm:$0xf]
    %v694 = vld [vmem:[#allocation6 + $0x34] sm:$0xf]
    %v695 = vld [vmem:[#allocation6 + $0x38] sm:$0xf]
    %v696 = vld [vmem:[#allocation6 + $0x3c] sm:$0xf]
    %v697 = vld [vmem:[#allocation6 + $0x40] sm:$0xf]
    %v698 = vld [vmem:[#allocation6 + $0x44] sm:$0xf]
    %v699 = vld [vmem:[#allocation6 + $0x48] sm:$0xf]
    %v700 = vld [vmem:[#allocation6 + $0x4c] sm:$0xf]
    %v701 = vld [vmem:[#allocation6 + $0x50] sm:$0xf]
    %v702 = vld [vmem:[#allocation6 + $0x54] sm:$0xf]
    %v703 = vld [vmem:[#allocation6 + $0x58] sm:$0xf]
    %v704 = vld [vmem:[#allocation6 + $0x5c] sm:$0xf]
    %v705 = vld [vmem:[#allocation6 + $0x60] sm:$0xf]
    %v706 = vld [vmem:[#allocation6 + $0x64] sm:$0xf]
    %v707 = vld [vmem:[#allocation6 + $0x68] sm:$0xf]
    %v708 = vld [vmem:[#allocation6 + $0x6c] sm:$0xf]
    %v709 = vld [vmem:[#allocation6 + $0x70] sm:$0xf]
    %v710 = vld [vmem:[#allocation6 + $0x74] sm:$0xf]
    %v711 = vld [vmem:[#allocation6 + $0x78] sm:$0xf]
    %v712 = vld [vmem:[#allocation6 + $0x7c] sm:$0xf]
    %v713 = vld [vmem:[#allocation8] sm:$0x1]
    %v715 = vperm.slane %v713, 0
    %v733 = vunpack.c.l.b16 %v665
    %v734 = vunpack.c.h.b16 %v665
    %v735 = vunpack.c.l.b16 %v666
    %v736 = vunpack.c.h.b16 %v666
    %v737 = vunpack.c.l.b16 %v667
    %v738 = vunpack.c.h.b16 %v667
    %v739 = vunpack.c.l.b16 %v668
    %v740 = vunpack.c.h.b16 %v668
    %v741 = vunpack.c.l.b16 %v669
    %v742 = vunpack.c.h.b16 %v669
    %v743 = vunpack.c.l.b16 %v670
    %v744 = vunpack.c.h.b16 %v670
    %v745 = vunpack.c.l.b16 %v671
    %v746 = vunpack.c.h.b16 %v671
    %v747 = vunpack.c.l.b16 %v672
    %v748 = vunpack.c.h.b16 %v672
    %v749 = vunpack.c.l.b16 %v673
    %v750 = vunpack.c.h.b16 %v673
    %v751 = vunpack.c.l.b16 %v674
    %v752 = vunpack.c.h.b16 %v674
    %v753 = vunpack.c.l.b16 %v675
    %v754 = vunpack.c.h.b16 %v675
    %v755 = vunpack.c.l.b16 %v676
    %v756 = vunpack.c.h.b16 %v676
    %v757 = vunpack.c.l.b16 %v677
    %v758 = vunpack.c.h.b16 %v677
    %v759 = vunpack.c.l.b16 %v678
    %v760 = vunpack.c.h.b16 %v678
    %v761 = vunpack.c.l.b16 %v679
    %v762 = vunpack.c.h.b16 %v679
    %v763 = vunpack.c.l.b16 %v680
    %v764 = vunpack.c.h.b16 %v680
    %v765 = vpack.c.b16 %v735, %v733
    %v766 = vpack.c.b16 %v736, %v734
    %v767 = vpack.c.b16 %v739, %v737
    %v768 = vpack.c.b16 %v740, %v738
    %v769 = vpack.c.b16 %v743, %v741
    %v770 = vpack.c.b16 %v744, %v742
    %v771 = vpack.c.b16 %v747, %v745
    %v772 = vpack.c.b16 %v748, %v746
    %v773 = vpack.c.b16 %v751, %v749
    %v774 = vpack.c.b16 %v752, %v750
    %v775 = vpack.c.b16 %v755, %v753
    %v776 = vpack.c.b16 %v756, %v754
    %v777 = vpack.c.b16 %v759, %v757
    %v778 = vpack.c.b16 %v760, %v758
    %v779 = vpack.c.b16 %v763, %v761
    %v780 = vpack.c.b16 %v764, %v762
    %v829 = vunpack.c.l.b16 %v681
    %v830 = vunpack.c.l.b16 %v682
    %v831 = vunpack.c.l.b16 %v683
    %v832 = vunpack.c.l.b16 %v684
    %v833 = vunpack.c.l.b16 %v685
    %v834 = vunpack.c.l.b16 %v686
    %v835 = vunpack.c.l.b16 %v687
    %v836 = vunpack.c.l.b16 %v688
    %v837 = vunpack.c.l.b16 %v689
    %v838 = vunpack.c.l.b16 %v690
    %v839 = vunpack.c.l.b16 %v691
    %v840 = vunpack.c.l.b16 %v692
    %v841 = vunpack.c.l.b16 %v693
    %v842 = vunpack.c.l.b16 %v694
    %v843 = vunpack.c.l.b16 %v695
    %v844 = vunpack.c.l.b16 %v696
    %v845 = vunpack.c.l.b16 %v697
    %v846 = vunpack.c.l.b16 %v698
    %v847 = vunpack.c.l.b16 %v699
    %v848 = vunpack.c.l.b16 %v700
    %v849 = vunpack.c.l.b16 %v701
    %v850 = vunpack.c.l.b16 %v702
    %v851 = vunpack.c.l.b16 %v703
    %v852 = vunpack.c.l.b16 %v704
    %v853 = vunpack.c.l.b16 %v705
    %v854 = vunpack.c.l.b16 %v706
    %v855 = vunpack.c.l.b16 %v707
    %v856 = vunpack.c.l.b16 %v708
    %v857 = vunpack.c.l.b16 %v709
    %v858 = vunpack.c.l.b16 %v710
    %v859 = vunpack.c.l.b16 %v711
    %v860 = vunpack.c.l.b16 %v712
    %v861 = vpack.c.b16 %v830, %v829
    %v862 = vpack.c.b16 %v832, %v831
    %v863 = vpack.c.b16 %v834, %v833
    %v864 = vpack.c.b16 %v836, %v835
    %v865 = vpack.c.b16 %v838, %v837
    %v866 = vpack.c.b16 %v840, %v839
    %v867 = vpack.c.b16 %v842, %v841
    %v868 = vpack.c.b16 %v844, %v843
    %v869 = vpack.c.b16 %v846, %v845
    %v870 = vpack.c.b16 %v848, %v847
    %v871 = vpack.c.b16 %v850, %v849
    %v872 = vpack.c.b16 %v852, %v851
    %v873 = vpack.c.b16 %v854, %v853
    %v874 = vpack.c.b16 %v856, %v855
    %v875 = vpack.c.b16 %v858, %v857
    %v876 = vpack.c.b16 %v860, %v859
    %893 = vmatpush.bf16.msra.mxu0 %v868
    %894 = vmatpush.bf16.msra.mxu0 %v867
    %895 = vmatpush.bf16.msra.mxu0 %v866
    %896 = vmatpush.bf16.msra.mxu0 %v865
    %897 = vmatpush.bf16.msra.mxu0 %v864
    %898 = vmatpush.bf16.msra.mxu0 %v863
    %899 = vmatpush.bf16.msra.mxu0 %v862
    %900 = vmatpush.bf16.msra.mxu0 %v861
    %901 = vmatmul.bf16.gmra.mxu0 %v765
    %v902 = vpop.f32.mrf.mxu0
    %v903 = vadd.f32 %v715, %v902
    %v904 = vpop.f32.mrf.mxu0
    %v905 = vadd.f32 %v715, %v904
    %906 = vmatmul.bf16.gmra.mxu0 %v767
    %v907 = vpop.f32.mrf.mxu0
    %v908 = vadd.f32 %v715, %v907
    %v909 = vpop.f32.mrf.mxu0
    %v910 = vadd.f32 %v715, %v909
    %911 = vmatmul.bf16.gmra.mxu0 %v769
    %v912 = vpop.f32.mrf.mxu0
    %v913 = vadd.f32 %v715, %v912
    %v914 = vpop.f32.mrf.mxu0
    %v915 = vadd.f32 %v715, %v914
    %916 = vmatmul.bf16.gmra.mxu0 %v771
    %v917 = vpop.f32.mrf.mxu0
    %v918 = vadd.f32 %v715, %v917
    %v919 = vpop.f32.mrf.mxu0
    %v920 = vadd.f32 %v715, %v919
    %921 = vmatmul.bf16.gmra.mxu0 %v773
    %v922 = vpop.f32.mrf.mxu0
    %v923 = vadd.f32 %v715, %v922
    %v924 = vpop.f32.mrf.mxu0
    %v925 = vadd.f32 %v715, %v924
    %926 = vmatmul.bf16.gmra.mxu0 %v775
    %v927 = vpop.f32.mrf.mxu0
    %v928 = vadd.f32 %v715, %v927
    %v929 = vpop.f32.mrf.mxu0
    %v930 = vadd.f32 %v715, %v929
    %931 = vmatmul.bf16.gmra.mxu0 %v777
    %v932 = vpop.f32.mrf.mxu0
    %v933 = vadd.f32 %v715, %v932
    %v934 = vpop.f32.mrf.mxu0
    %v935 = vadd.f32 %v715, %v934
    %936 = vmatmul.bf16.gmra.mxu0 %v779
    %v937 = vpop.f32.mrf.mxu0
    %v938 = vadd.f32 %v715, %v937
    %v939 = vpop.f32.mrf.mxu0
    %v940 = vadd.f32 %v715, %v939
    %941 = vdwg.mxu0
    %942 = vmatpush.bf16.msra.mxu0 %v876
    %943 = vmatpush.bf16.msra.mxu0 %v875
    %944 = vmatpush.bf16.msra.mxu0 %v874
    %945 = vmatpush.bf16.msra.mxu0 %v873
    %946 = vmatpush.bf16.msra.mxu0 %v872
    %947 = vmatpush.bf16.msra.mxu0 %v871
    %948 = vmatpush.bf16.msra.mxu0 %v870
    %949 = vmatpush.bf16.msra.mxu0 %v869
    %950 = vmatmul.bf16.gmra.mxu0 %v766
    %v951 = vpop.f32.mrf.mxu0
    %v952 = vadd.f32 %v903, %v951
    %v953 = vpop.f32.mrf.mxu0
    %v954 = vadd.f32 %v905, %v953
    %955 = vmatmul.bf16.gmra.mxu0 %v768
    %v956 = vpop.f32.mrf.mxu0
    %v957 = vadd.f32 %v908, %v956
    %v958 = vpop.f32.mrf.mxu0
    %v959 = vadd.f32 %v910, %v958
    %960 = vmatmul.bf16.gmra.mxu0 %v770
    %v961 = vpop.f32.mrf.mxu0
    %v962 = vadd.f32 %v913, %v961
    %v963 = vpop.f32.mrf.mxu0
    %v964 = vadd.f32 %v915, %v963
    %965 = vmatmul.bf16.gmra.mxu0 %v772
    %v966 = vpop.f32.mrf.mxu0
    %v967 = vadd.f32 %v918, %v966
    %v968 = vpop.f32.mrf.mxu0
    %v969 = vadd.f32 %v920, %v968
    %970 = vmatmul.bf16.gmra.mxu0 %v774
    %v971 = vpop.f32.mrf.mxu0
    %v972 = vadd.f32 %v923, %v971
    %v973 = vpop.f32.mrf.mxu0
    %v974 = vadd.f32 %v925, %v973
    %975 = vmatmul.bf16.gmra.mxu0 %v776
    %v976 = vpop.f32.mrf.mxu0
    %v977 = vadd.f32 %v928, %v976
    %v978 = vpop.f32.mrf.mxu0
    %v979 = vadd.f32 %v930, %v978
    %980 = vmatmul.bf16.gmra.mxu0 %v778
    %v981 = vpop.f32.mrf.mxu0
    %v982 = vadd.f32 %v933, %v981
    %v983 = vpop.f32.mrf.mxu0
    %v984 = vadd.f32 %v935, %v983
    %985 = vmatmul.bf16.gmra.mxu0 %v780
    %v986 = vpop.f32.mrf.mxu0
    %v987 = vadd.f32 %v938, %v986
    %v988 = vpop.f32.mrf.mxu0
    %v989 = vadd.f32 %v940, %v988
    %990 = vdwg.mxu0
    %v991 = vmax.f32 %v952, 0.0
    %v992 = vmax.f32 %v954, 0.0
    %v993 = vmax.f32 %v957, 0.0
    %v994 = vmax.f32 %v959, 0.0
    %v995 = vmax.f32 %v962, 0.0
    %v996 = vmax.f32 %v964, 0.0
    %v997 = vmax.f32 %v967, 0.0
    %v998 = vmax.f32 %v969, 0.0
    %v999 = vmax.f32 %v972, 0.0
    %v1000 = vmax.f32 %v974, 0.0
    %v1001 = vmax.f32 %v977, 0.0
    %v1002 = vmax.f32 %v979, 0.0
    %v1003 = vmax.f32 %v982, 0.0
    %v1004 = vmax.f32 %v984, 0.0
    %v1005 = vmax.f32 %v987, 0.0
    %v1006 = vmax.f32 %v989, 0.0
    %1007 = vst [vmem:[#allocation9] sm:$0xff] %v991
    %1008 = vst [vmem:[#allocation9 + $0x8] sm:$0xff] %v992
    %1009 = vst [vmem:[#allocation9 + $0x10] sm:$0xff] %v993
    %1010 = vst [vmem:[#allocation9 + $0x18] sm:$0xff] %v994
    %1011 = vst [vmem:[#allocation9 + $0x20] sm:$0xff] %v995
    %1012 = vst [vmem:[#allocation9 + $0x28] sm:$0xff] %v996
    %1013 = vst [vmem:[#allocation9 + $0x30] sm:$0xff] %v997
    %1014 = vst [vmem:[#allocation9 + $0x38] sm:$0xff] %v998
    %1015 = vst [vmem:[#allocation9 + $0x40] sm:$0xff] %v999
    %1016 = vst [vmem:[#allocation9 + $0x48] sm:$0xff] %v1000
    %1017 = vst [vmem:[#allocation9 + $0x50] sm:$0xff] %v1001
    %1018 = vst [vmem:[#allocation9 + $0x58] sm:$0xff] %v1002
    %1019 = vst [vmem:[#allocation9 + $0x60] sm:$0xff] %v1003
    %1020 = vst [vmem:[#allocation9 + $0x68] sm:$0xff] %v1004
    %1021 = vst [vmem:[#allocation9 + $0x70] sm:$0xff] %v1005
    %1022 = vst [vmem:[#allocation9 + $0x78] sm:$0xff] %v1006
    // Predicated region
    $region38: #{linear_layer_forward.1} parent=1 // pred_check
      _
    $region39: #{linear_layer_forward.1} parent=1 // pred_check_branch
      %1024 = sbr.rel (0) target = $region41
    $region40: #{linear_layer_forward.1} parent=1 // pred_region
      %1026 = vsyncadd [#allocation5], 0
      %s1027 = sshll.u32 [#allocation9], 4
      %s1028 = int_to_ptr.vmem [resolvable:$true] %s1027
      %s1029 = sshll.u32 %s5, 4
      %s1030 = int_to_ptr.hbm [resolvable:$true] %s1029
      %1035 = dma.vmem_to_hbm [thread:$0]  %s1028, 2048, %s1030, [#allocation5], 128, 128, 8
    $region41: #{linear_layer_forward.1} parent=1 // pred_fallthru
      _
    // Predicated region
    $region42: #{linear_layer_forward.1} parent=1 // pred_check
      _
    $region43: #{linear_layer_forward.1} parent=1 // pred_check_branch
      %1037 = sbr.rel (0) target = $region45
    $region44: #{linear_layer_forward.1} parent=1 // pred_region
      %1039 = dma.done [#allocation5], 2048
    $region45: #{linear_layer_forward.1} parent=1 // pred_fallthru
      _
    %1040 = vsyncpa [#allocation4], 1
    %1041 = vsyncpa [#allocation7], 1
    %1042 = vsyncpa [#allocation5], 1

</llo_original>
